<compile_context>
chip_gen: v7x
topology: tpu7x:2x2x1
jax: 0.10.0
libtpu: 0.0.40
codegen_flags: <defaults>
</compile_context>

<pallas_src>
import jax
import jax.numpy as jnp
from jax import lax
from jax.experimental import pallas as pl
from jax.experimental.pallas import tpu as pltpu


def lstm_classifier_kernel(x_ref, wih_ref, whh_ref, b_ref, fcw_ref, fcb_ref,
                           out_ref, xw_sc, h_sc, c_sc):
    """One time-chunk of the LSTM recurrence + (on the last chunk) the FC head.

    x_ref:   (Tc*Bp, D)  time-major input chunk, batch padded to 8    [mm dtype]
    wih_ref: (D, 4H)     W_ih^T                                       [mm dtype]
    whh_ref: (H, 4H)     W_hh^T (f32: tiny serial-chain matmul)       [f32]
    b_ref:   (1, 4H)     b_ih + b_hh                                  [f32]
    fcw_ref: (H, Op)     fc weight^T, cols zero-padded to 128 mult    [f32]
    fcb_ref: (1, Op)     fc bias, zero-padded                         [f32]
    out_ref: (Bp, Op)    padded logits, written on the last chunk only
    xw_sc:   (Tc*Bp, 4H) VMEM scratch: chunk-local input projection   [f32]
    h_sc/c_sc: (Bp, H)   VMEM scratch: recurrent state carried across chunks
    """
    Bp, H = h_sc.shape
    Tc = x_ref.shape[0] // Bp
    chunk = pl.program_id(0)

    @pl.when(chunk == 0)
    def _():
        h_sc[...] = jnp.zeros_like(h_sc)
        c_sc[...] = jnp.zeros_like(c_sc)

    # Hoisted input projection + bias: one MXU call covering the whole chunk.
    xw_sc[...] = (jnp.dot(x_ref[...], wih_ref[...],
                          preferred_element_type=jnp.float32) + b_ref[...])

    def step(t, carry):
        h, c = carry
        row = pl.multiple_of(t * Bp, 8)                  # sublane-aligned start
        gates = xw_sc[pl.ds(row, Bp), :] + jnp.dot(
            h, whh_ref[...], preferred_element_type=jnp.float32)
        # PyTorch gate order: i, f, g, o (contiguous 64-lane slices of 4H=256).
        i_g = jax.nn.sigmoid(gates[:, 0 * H:1 * H])
        f_g = jax.nn.sigmoid(gates[:, 1 * H:2 * H])
        g_g = jnp.tanh(gates[:, 2 * H:3 * H])
        o_g = jax.nn.sigmoid(gates[:, 3 * H:4 * H])
        c = f_g * c + i_g * g_g
        h = o_g * jnp.tanh(c)
        return h, c

    h, c = lax.fori_loop(0, Tc, step, (h_sc[...], c_sc[...]), unroll=True)
    h_sc[...] = h
    c_sc[...] = c

    @pl.when(chunk == pl.num_programs(0) - 1)
    def _():
        # Fused FC head on the final hidden state; lane-dense (Op multiple of
        # 128) output -> unmasked vector stores.
        out_ref[...] = (jnp.dot(h, fcw_ref[...],
                                preferred_element_type=jnp.float32)
                        + fcb_ref[...])


def prepare_params(params, use_bf16_matmul=True):
    """One-time weight preprocessing (transpose / pad / cast), OUTSIDE the
    forward path — at small shapes the per-call XLA pad/transpose/cast ops
    would otherwise dominate wall clock."""
    w_ih, w_hh = params["w_ih"], params["w_hh"]
    fc_w, fc_b = params["fc_w"], params["fc_b"]
    H = w_hh.shape[1]
    O = fc_w.shape[0]
    Op = ((O + 127) // 128) * 128                          # lane-dense output
    mm_dtype = jnp.bfloat16 if use_bf16_matmul else jnp.float32
    bias = (params["b_ih"] + params["b_hh"]).reshape(1, 4 * H)
    return {
        "mm_dtype": mm_dtype, "H": H, "O": O, "Op": Op,
        # Input projection operands may be bf16 (big, one-shot, f32 accum).
        "wih": jnp.transpose(w_ih).astype(mm_dtype),                 # (D, 4H)
        # Recurrent + head operands stay f32: tiny matmuls on the serial chain,
        # and bf16 rounding of h would compound over the sequence.
        "whh": jnp.transpose(w_hh).astype(jnp.float32),              # (H, 4H)
        "bias": bias.astype(jnp.float32),                            # (1, 4H)
        "fcw": jnp.pad(jnp.transpose(fc_w),
                       ((0, 0), (0, Op - O))).astype(jnp.float32),   # (H, Op)
        "fcb": jnp.pad(fc_b, (0, Op - O)).reshape(1, Op)
                  .astype(jnp.float32),                              # (1, Op)
    }


def _pick_time_chunk(T, max_chunk):
    tc = max(1, min(T, max_chunk))
    while T % tc:
        tc -= 1
    return tc


def emotion_classifier_forward(x, prepared, max_time_chunk=8):
    """x: (B, T, D) float32 batch-first, like PyTorch. Returns (B, O) logits."""
    B, T, D = x.shape
    H, O, Op = prepared["H"], prepared["O"], prepared["Op"]
    mm_dtype = prepared["mm_dtype"]

    Bp = ((B + 7) // 8) * 8            # pad batch to a full f32 sublane tile
    Tc = _pick_time_chunk(T, max_time_chunk)
    n_chunks = T // Tc

    # Batch rows are independent in both the LSTM and the head, so zero-padded
    # rows never contaminate real rows; they are sliced off below.
    # TODO(synk): at production T (esp. v5e), produce x time-major upstream or
    # consume batch-first x via the grid index_map instead of this wrapper
    # transpose (it costs an extra HBM pass over x).
    xp = jnp.pad(x, ((0, Bp - B), (0, 0), (0, 0)))
    x_tm = jnp.transpose(xp, (1, 0, 2)).reshape(T * Bp, D).astype(mm_dtype)

    out_padded = pl.pallas_call(
        lstm_classifier_kernel,
        out_shape=jax.ShapeDtypeStruct((Bp, Op), jnp.float32),
        grid_spec=pltpu.PrefetchScalarGridSpec(
            num_scalar_prefetch=0,
            grid=(n_chunks,),
            in_specs=[
                # x streams one time-chunk per grid step; BlockSpec double-
                # buffering overlaps the next chunk's DMA with the recurrence.
                pl.BlockSpec((Tc * Bp, D), lambda tc: (tc, 0)),
                # Weights: whole-array blocks, same index every step -> resident.
                pl.BlockSpec((D, 4 * H), lambda tc: (0, 0)),
                pl.BlockSpec((H, 4 * H), lambda tc: (0, 0)),
                pl.BlockSpec((1, 4 * H), lambda tc: (0, 0)),
                pl.BlockSpec((H, Op), lambda tc: (0, 0)),
                pl.BlockSpec((1, Op), lambda tc: (0, 0)),
            ],
            out_specs=pl.BlockSpec((Bp, Op), lambda tc: (0, 0)),
            scratch_shapes=[
                pltpu.VMEM((Tc * Bp, 4 * H), jnp.float32),   # per-chunk xW
                pltpu.VMEM((Bp, H), jnp.float32),            # h carry
                pltpu.VMEM((Bp, H), jnp.float32),            # c carry
            ]),
        compiler_params=pltpu.CompilerParams(
            dimension_semantics=("arbitrary",)),             # serial in time
    )(x_tm, prepared["wih"], prepared["whh"], prepared["bias"],
      prepared["fcw"], prepared["fcb"])
    return out_padded[:B, :O]


def init_params(key, input_dim, hidden_dim, output_dim):
    """Deterministic init mimicking PyTorch's U(-1/sqrt(H), 1/sqrt(H))."""
    k = 1.0 / jnp.sqrt(jnp.float32(hidden_dim))
    keys = jax.random.split(key, 6)
    u = lambda kk, shape: jax.random.uniform(kk, shape, jnp.float32, -k, k)
    return {
        "w_ih": u(keys[0], (4 * hidden_dim, input_dim)),
        "w_hh": u(keys[1], (4 * hidden_dim, hidden_dim)),
        "b_ih": u(keys[2], (4 * hidden_dim,)),
        "b_hh": u(keys[3], (4 * hidden_dim,)),
        "fc_w": u(keys[4], (output_dim, hidden_dim)),
        "fc_b": u(keys[5], (output_dim,)),
    }


def reference_forward(x, params):
    """Pure-JAX f32 reference of the PyTorch module."""
    w_ih, w_hh = params["w_ih"], params["w_hh"]
    b = params["b_ih"] + params["b_hh"]
    B, T, D = x.shape
    H = w_hh.shape[1]
    h = jnp.zeros((B, H), jnp.float32)
    c = jnp.zeros((B, H), jnp.float32)
    for t in range(T):
        gates = x[:, t, :] @ w_ih.T + h @ w_hh.T + b
        i = jax.nn.sigmoid(gates[:, 0 * H:1 * H])
        f = jax.nn.sigmoid(gates[:, 1 * H:2 * H])
        g = jnp.tanh(gates[:, 2 * H:3 * H])
        o = jax.nn.sigmoid(gates[:, 3 * H:4 * H])
        c = f * c + i * g
        h = o * jnp.tanh(c)
    return h @ params["fc_w"].T + params["fc_b"]


if __name__ == "__main__":
    # Module constants: encoding_dim = input_dim = 128, hidden_dim = 64,
    # num_layers = 1, output_dim = number of unique emotion labels (pick 4).
    batch, seq_len = 2, 8
    input_dim, hidden_dim, output_dim = 128, 64, 4

    key = jax.random.PRNGKey(0)
    kx, kp = jax.random.split(key)
    x = jax.random.normal(kx, (batch, seq_len, input_dim), jnp.float32)
    params = init_params(kp, input_dim, hidden_dim, output_dim)

    ref = reference_forward(x, params)

    # Strict semantic check: all-f32 operand path, 2 time chunks so the
    # carried h/c VMEM scratch across grid steps is exercised.
    prep_f32 = prepare_params(params, use_bf16_matmul=False)
    out_f32 = jax.block_until_ready(
        emotion_classifier_forward(x, prep_f32, max_time_chunk=4))
    assert out_f32.shape == (batch, output_dim)
    assert jnp.allclose(out_f32, ref, rtol=1e-4, atol=1e-4), "f32 mismatch"

    # Default fast path: bf16 operands only for the hoisted input projection;
    # recurrent matmul, state, head and all nonlinearities stay f32.
    prep = prepare_params(params, use_bf16_matmul=True)
    out = jax.block_until_ready(emotion_classifier_forward(x, prep))
    assert out.shape == (batch, output_dim)
    assert jnp.allclose(out, ref, rtol=2e-2, atol=2e-2), "bf16 mismatch"

    print("KERNEL_OK")
</pallas_src>

<mosaic_0001>
module attributes {stable_mosaic.version = 11 : i64} {
  func.func @lstm_classifier_kernel(%arg0: i32, %arg1: memref<32x128xf32, #tpu.memory_space<vmem>>, %arg2: memref<128x256xf32, #tpu.memory_space<vmem>>, %arg3: memref<64x256xf32, #tpu.memory_space<vmem>>, %arg4: memref<1x256xf32, #tpu.memory_space<vmem>>, %arg5: memref<64x128xf32, #tpu.memory_space<vmem>>, %arg6: memref<1x128xf32, #tpu.memory_space<vmem>>, %arg7: memref<8x128xf32, #tpu.memory_space<vmem>>, %arg8: memref<32x256xf32, #tpu.memory_space<vmem>>, %arg9: memref<8x64xf32, #tpu.memory_space<vmem>>, %arg10: memref<8x64xf32, #tpu.memory_space<vmem>>) attributes {dimension_semantics = [#tpu.dimension_semantics<arbitrary>], iteration_bounds = array<i64: 2>, scalar_prefetch = 0 : i64, scratch_operands = 3 : i64, tpu.core_type = #tpu.core_type<tc>, window_params = [{transform_indices = @transform_0, window_bounds = array<i64: 32, 128>}, {pipeline_mode = #tpu.pipeline_mode<synchronous>, transform_indices = @transform_1, window_bounds = array<i64: 128, 256>}, {pipeline_mode = #tpu.pipeline_mode<synchronous>, transform_indices = @transform_2, window_bounds = array<i64: 64, 256>}, {pipeline_mode = #tpu.pipeline_mode<synchronous>, transform_indices = @transform_3, window_bounds = array<i64: 1, 256>}, {pipeline_mode = #tpu.pipeline_mode<synchronous>, transform_indices = @transform_4, window_bounds = array<i64: 64, 128>}, {pipeline_mode = #tpu.pipeline_mode<synchronous>, transform_indices = @transform_5, window_bounds = array<i64: 1, 128>}, {pipeline_mode = #tpu.pipeline_mode<synchronous>, transform_indices = @transform_6, window_bounds = array<i64: 8, 128>}]} {
    %c0_i32 = arith.constant 0 : i32
    %0 = arith.cmpi eq, %arg0, %c0_i32 : i32
    %1 = arith.extui %0 : i1 to i32
    %c0_i32_0 = arith.constant 0 : i32
    %2 = arith.cmpi ne, %1, %c0_i32_0 : i32
    scf.if %2 {
      %cst_50 = arith.constant 0.000000e+00 : f32
      %145 = vector.broadcast %cst_50 : f32 to vector<8x64xf32>
      %c0_51 = arith.constant 0 : index
      %c0_52 = arith.constant 0 : index
      %146 = vector.load %arg9[%c0_51, %c0_52] : memref<8x64xf32, #tpu.memory_space<vmem>>, vector<8x64xf32>
      tpu.vector_store %arg9[%c0_51, %c0_52], %145 {strides = array<i32>} : memref<8x64xf32, #tpu.memory_space<vmem>>, vector<8x64xf32>,
      %cst_53 = arith.constant 0.000000e+00 : f32
      %147 = vector.broadcast %cst_53 : f32 to vector<8x64xf32>
      %c0_54 = arith.constant 0 : index
      %c0_55 = arith.constant 0 : index
      %148 = vector.load %arg10[%c0_54, %c0_55] : memref<8x64xf32, #tpu.memory_space<vmem>>, vector<8x64xf32>
      tpu.vector_store %arg10[%c0_54, %c0_55], %147 {strides = array<i32>} : memref<8x64xf32, #tpu.memory_space<vmem>>, vector<8x64xf32>,
    } else {
    }
    %c0 = arith.constant 0 : index
    %c0_1 = arith.constant 0 : index
    %3 = vector.load %arg1[%c0, %c0_1] : memref<32x128xf32, #tpu.memory_space<vmem>>, vector<32x128xf32>
    %c0_2 = arith.constant 0 : index
    %c0_3 = arith.constant 0 : index
    %4 = vector.load %arg2[%c0_2, %c0_3] : memref<128x256xf32, #tpu.memory_space<vmem>>, vector<128x256xf32>
    %cst = arith.constant dense<0.000000e+00> : vector<32x256xf32>
    %5 = tpu.matmul %3, %4, %cst {dimension_numbers = #tpu.dot_dimension_numbers<[1], [0], [0], [1], [0, 0, 1, 1], [], []>} : vector<32x128xf32>, vector<128x256xf32>, vector<32x256xf32> -> vector<32x256xf32>
    %c0_4 = arith.constant 0 : index
    %c0_5 = arith.constant 0 : index
    %6 = vector.load %arg4[%c0_4, %c0_5] : memref<1x256xf32, #tpu.memory_space<vmem>>, vector<1x256xf32>
    %7 = vector.broadcast %6 : vector<1x256xf32> to vector<32x256xf32>
    %8 = arith.addf %5, %7 : vector<32x256xf32>
    %c0_6 = arith.constant 0 : index
    %c0_7 = arith.constant 0 : index
    %9 = vector.load %arg8[%c0_6, %c0_7] : memref<32x256xf32, #tpu.memory_space<vmem>>, vector<32x256xf32>
    tpu.vector_store %arg8[%c0_6, %c0_7], %8 {strides = array<i32>} : memref<32x256xf32, #tpu.memory_space<vmem>>, vector<32x256xf32>,
    %c0_8 = arith.constant 0 : index
    %c0_9 = arith.constant 0 : index
    %10 = vector.load %arg9[%c0_8, %c0_9] : memref<8x64xf32, #tpu.memory_space<vmem>>, vector<8x64xf32>
    %c0_10 = arith.constant 0 : index
    %c0_11 = arith.constant 0 : index
    %11 = vector.load %arg10[%c0_10, %c0_11] : memref<8x64xf32, #tpu.memory_space<vmem>>, vector<8x64xf32>
    %c0_i32_12 = arith.constant 0 : i32
    %c8_i32 = arith.constant 8 : i32
    %12 = arith.muli %c0_i32_12, %c8_i32 : i32
    %13 = tpu.assume_multiple %12, 8 : i32
    %14 = arith.index_cast %13 : i32 to index
    %c0_13 = arith.constant 0 : index
    %15 = vector.load %arg8[%14, %c0_13] : memref<32x256xf32, #tpu.memory_space<vmem>>, vector<8x256xf32>
    %c0_14 = arith.constant 0 : index
    %c0_15 = arith.constant 0 : index
    %16 = vector.load %arg3[%c0_14, %c0_15] : memref<64x256xf32, #tpu.memory_space<vmem>>, vector<64x256xf32>
    %cst_16 = arith.constant dense<0.000000e+00> : vector<8x256xf32>
    %17 = tpu.matmul %10, %16, %cst_16 {dimension_numbers = #tpu.dot_dimension_numbers<[1], [0], [0], [1], [0, 0, 1, 1], [], []>} : vector<8x64xf32>, vector<64x256xf32>, vector<8x256xf32> -> vector<8x256xf32>
    %18 = arith.addf %15, %17 : vector<8x256xf32>
    %19 = vector.extract_strided_slice %18 {offsets = [0, 0], sizes = [8, 64], strides = [1, 1]} : vector<8x256xf32> to vector<8x64xf32>
    %20 = arith.negf %19 : vector<8x64xf32>
    %21 = math.exp %20 : vector<8x64xf32>
    %cst_17 = arith.constant 1.000000e+00 : f32
    %22 = vector.broadcast %cst_17 : f32 to vector<8x64xf32>
    %23 = arith.addf %22, %21 : vector<8x64xf32>
    %24 = arith.divf %22, %23 : vector<8x64xf32>
    %25 = vector.extract_strided_slice %18 {offsets = [0, 64], sizes = [8, 64], strides = [1, 1]} : vector<8x256xf32> to vector<8x64xf32>
    %26 = arith.negf %25 : vector<8x64xf32>
    %27 = math.exp %26 : vector<8x64xf32>
    %cst_18 = arith.constant 1.000000e+00 : f32
    %28 = vector.broadcast %cst_18 : f32 to vector<8x64xf32>
    %29 = arith.addf %28, %27 : vector<8x64xf32>
    %30 = arith.divf %28, %29 : vector<8x64xf32>
    %31 = vector.extract_strided_slice %18 {offsets = [0, 128], sizes = [8, 64], strides = [1, 1]} : vector<8x256xf32> to vector<8x64xf32>
    %32 = math.tanh %31 : vector<8x64xf32>
    %33 = vector.extract_strided_slice %18 {offsets = [0, 192], sizes = [8, 64], strides = [1, 1]} : vector<8x256xf32> to vector<8x64xf32>
    %34 = arith.negf %33 : vector<8x64xf32>
    %35 = math.exp %34 : vector<8x64xf32>
    %cst_19 = arith.constant 1.000000e+00 : f32
    %36 = vector.broadcast %cst_19 : f32 to vector<8x64xf32>
    %37 = arith.addf %36, %35 : vector<8x64xf32>
    %38 = arith.divf %36, %37 : vector<8x64xf32>
    %39 = arith.mulf %30, %11 : vector<8x64xf32>
    %40 = arith.mulf %24, %32 : vector<8x64xf32>
    %41 = arith.addf %39, %40 : vector<8x64xf32>
    %42 = math.tanh %41 : vector<8x64xf32>
    %43 = arith.mulf %38, %42 : vector<8x64xf32>
    %c1_i32 = arith.constant 1 : i32
    %c8_i32_20 = arith.constant 8 : i32
    %44 = arith.muli %c1_i32, %c8_i32_20 : i32
    %45 = tpu.assume_multiple %44, 8 : i32
    %46 = arith.index_cast %45 : i32 to index
    %c0_21 = arith.constant 0 : index
    %47 = vector.load %arg8[%46, %c0_21] : memref<32x256xf32, #tpu.memory_space<vmem>>, vector<8x256xf32>
    %c0_22 = arith.constant 0 : index
    %c0_23 = arith.constant 0 : index
    %48 = vector.load %arg3[%c0_22, %c0_23] : memref<64x256xf32, #tpu.memory_space<vmem>>, vector<64x256xf32>
    %cst_24 = arith.constant dense<0.000000e+00> : vector<8x256xf32>
    %49 = tpu.matmul %43, %48, %cst_24 {dimension_numbers = #tpu.dot_dimension_numbers<[1], [0], [0], [1], [0, 0, 1, 1], [], []>} : vector<8x64xf32>, vector<64x256xf32>, vector<8x256xf32> -> vector<8x256xf32>
    %50 = arith.addf %47, %49 : vector<8x256xf32>
    %51 = vector.extract_strided_slice %50 {offsets = [0, 0], sizes = [8, 64], strides = [1, 1]} : vector<8x256xf32> to vector<8x64xf32>
    %52 = arith.negf %51 : vector<8x64xf32>
    %53 = math.exp %52 : vector<8x64xf32>
    %cst_25 = arith.constant 1.000000e+00 : f32
    %54 = vector.broadcast %cst_25 : f32 to vector<8x64xf32>
    %55 = arith.addf %54, %53 : vector<8x64xf32>
    %56 = arith.divf %54, %55 : vector<8x64xf32>
    %57 = vector.extract_strided_slice %50 {offsets = [0, 64], sizes = [8, 64], strides = [1, 1]} : vector<8x256xf32> to vector<8x64xf32>
    %58 = arith.negf %57 : vector<8x64xf32>
    %59 = math.exp %58 : vector<8x64xf32>
    %cst_26 = arith.constant 1.000000e+00 : f32
    %60 = vector.broadcast %cst_26 : f32 to vector<8x64xf32>
    %61 = arith.addf %60, %59 : vector<8x64xf32>
    %62 = arith.divf %60, %61 : vector<8x64xf32>
    %63 = vector.extract_strided_slice %50 {offsets = [0, 128], sizes = [8, 64], strides = [1, 1]} : vector<8x256xf32> to vector<8x64xf32>
    %64 = math.tanh %63 : vector<8x64xf32>
    %65 = vector.extract_strided_slice %50 {offsets = [0, 192], sizes = [8, 64], strides = [1, 1]} : vector<8x256xf32> to vector<8x64xf32>
    %66 = arith.negf %65 : vector<8x64xf32>
    %67 = math.exp %66 : vector<8x64xf32>
    %cst_27 = arith.constant 1.000000e+00 : f32
    %68 = vector.broadcast %cst_27 : f32 to vector<8x64xf32>
    %69 = arith.addf %68, %67 : vector<8x64xf32>
    %70 = arith.divf %68, %69 : vector<8x64xf32>
    %71 = arith.mulf %62, %41 : vector<8x64xf32>
    %72 = arith.mulf %56, %64 : vector<8x64xf32>
    %73 = arith.addf %71, %72 : vector<8x64xf32>
    %74 = math.tanh %73 : vector<8x64xf32>
    %75 = arith.mulf %70, %74 : vector<8x64xf32>
    %c2_i32 = arith.constant 2 : i32
    %c8_i32_28 = arith.constant 8 : i32
    %76 = arith.muli %c2_i32, %c8_i32_28 : i32
    %77 = tpu.assume_multiple %76, 8 : i32
    %78 = arith.index_cast %77 : i32 to index
    %c0_29 = arith.constant 0 : index
    %79 = vector.load %arg8[%78, %c0_29] : memref<32x256xf32, #tpu.memory_space<vmem>>, vector<8x256xf32>
    %c0_30 = arith.constant 0 : index
    %c0_31 = arith.constant 0 : index
    %80 = vector.load %arg3[%c0_30, %c0_31] : memref<64x256xf32, #tpu.memory_space<vmem>>, vector<64x256xf32>
    %cst_32 = arith.constant dense<0.000000e+00> : vector<8x256xf32>
    %81 = tpu.matmul %75, %80, %cst_32 {dimension_numbers = #tpu.dot_dimension_numbers<[1], [0], [0], [1], [0, 0, 1, 1], [], []>} : vector<8x64xf32>, vector<64x256xf32>, vector<8x256xf32> -> vector<8x256xf32>
    %82 = arith.addf %79, %81 : vector<8x256xf32>
    %83 = vector.extract_strided_slice %82 {offsets = [0, 0], sizes = [8, 64], strides = [1, 1]} : vector<8x256xf32> to vector<8x64xf32>
    %84 = arith.negf %83 : vector<8x64xf32>
    %85 = math.exp %84 : vector<8x64xf32>
    %cst_33 = arith.constant 1.000000e+00 : f32
    %86 = vector.broadcast %cst_33 : f32 to vector<8x64xf32>
    %87 = arith.addf %86, %85 : vector<8x64xf32>
    %88 = arith.divf %86, %87 : vector<8x64xf32>
    %89 = vector.extract_strided_slice %82 {offsets = [0, 64], sizes = [8, 64], strides = [1, 1]} : vector<8x256xf32> to vector<8x64xf32>
    %90 = arith.negf %89 : vector<8x64xf32>
    %91 = math.exp %90 : vector<8x64xf32>
    %cst_34 = arith.constant 1.000000e+00 : f32
    %92 = vector.broadcast %cst_34 : f32 to vector<8x64xf32>
    %93 = arith.addf %92, %91 : vector<8x64xf32>
    %94 = arith.divf %92, %93 : vector<8x64xf32>
    %95 = vector.extract_strided_slice %82 {offsets = [0, 128], sizes = [8, 64], strides = [1, 1]} : vector<8x256xf32> to vector<8x64xf32>
    %96 = math.tanh %95 : vector<8x64xf32>
    %97 = vector.extract_strided_slice %82 {offsets = [0, 192], sizes = [8, 64], strides = [1, 1]} : vector<8x256xf32> to vector<8x64xf32>
    %98 = arith.negf %97 : vector<8x64xf32>
    %99 = math.exp %98 : vector<8x64xf32>
    %cst_35 = arith.constant 1.000000e+00 : f32
    %100 = vector.broadcast %cst_35 : f32 to vector<8x64xf32>
    %101 = arith.addf %100, %99 : vector<8x64xf32>
    %102 = arith.divf %100, %101 : vector<8x64xf32>
    %103 = arith.mulf %94, %73 : vector<8x64xf32>
    %104 = arith.mulf %88, %96 : vector<8x64xf32>
    %105 = arith.addf %103, %104 : vector<8x64xf32>
    %106 = math.tanh %105 : vector<8x64xf32>
    %107 = arith.mulf %102, %106 : vector<8x64xf32>
    %c3_i32 = arith.constant 3 : i32
    %c8_i32_36 = arith.constant 8 : i32
    %108 = arith.muli %c3_i32, %c8_i32_36 : i32
    %109 = tpu.assume_multiple %108, 8 : i32
    %110 = arith.index_cast %109 : i32 to index
    %c0_37 = arith.constant 0 : index
    %111 = vector.load %arg8[%110, %c0_37] : memref<32x256xf32, #tpu.memory_space<vmem>>, vector<8x256xf32>
    %c0_38 = arith.constant 0 : index
    %c0_39 = arith.constant 0 : index
    %112 = vector.load %arg3[%c0_38, %c0_39] : memref<64x256xf32, #tpu.memory_space<vmem>>, vector<64x256xf32>
    %cst_40 = arith.constant dense<0.000000e+00> : vector<8x256xf32>
    %113 = tpu.matmul %107, %112, %cst_40 {dimension_numbers = #tpu.dot_dimension_numbers<[1], [0], [0], [1], [0, 0, 1, 1], [], []>} : vector<8x64xf32>, vector<64x256xf32>, vector<8x256xf32> -> vector<8x256xf32>
    %114 = arith.addf %111, %113 : vector<8x256xf32>
    %115 = vector.extract_strided_slice %114 {offsets = [0, 0], sizes = [8, 64], strides = [1, 1]} : vector<8x256xf32> to vector<8x64xf32>
    %116 = arith.negf %115 : vector<8x64xf32>
    %117 = math.exp %116 : vector<8x64xf32>
    %cst_41 = arith.constant 1.000000e+00 : f32
    %118 = vector.broadcast %cst_41 : f32 to vector<8x64xf32>
    %119 = arith.addf %118, %117 : vector<8x64xf32>
    %120 = arith.divf %118, %119 : vector<8x64xf32>
    %121 = vector.extract_strided_slice %114 {offsets = [0, 64], sizes = [8, 64], strides = [1, 1]} : vector<8x256xf32> to vector<8x64xf32>
    %122 = arith.negf %121 : vector<8x64xf32>
    %123 = math.exp %122 : vector<8x64xf32>
    %cst_42 = arith.constant 1.000000e+00 : f32
    %124 = vector.broadcast %cst_42 : f32 to vector<8x64xf32>
    %125 = arith.addf %124, %123 : vector<8x64xf32>
    %126 = arith.divf %124, %125 : vector<8x64xf32>
    %127 = vector.extract_strided_slice %114 {offsets = [0, 128], sizes = [8, 64], strides = [1, 1]} : vector<8x256xf32> to vector<8x64xf32>
    %128 = math.tanh %127 : vector<8x64xf32>
    %129 = vector.extract_strided_slice %114 {offsets = [0, 192], sizes = [8, 64], strides = [1, 1]} : vector<8x256xf32> to vector<8x64xf32>
    %130 = arith.negf %129 : vector<8x64xf32>
    %131 = math.exp %130 : vector<8x64xf32>
    %cst_43 = arith.constant 1.000000e+00 : f32
    %132 = vector.broadcast %cst_43 : f32 to vector<8x64xf32>
    %133 = arith.addf %132, %131 : vector<8x64xf32>
    %134 = arith.divf %132, %133 : vector<8x64xf32>
    %135 = arith.mulf %126, %105 : vector<8x64xf32>
    %136 = arith.mulf %120, %128 : vector<8x64xf32>
    %137 = arith.addf %135, %136 : vector<8x64xf32>
    %138 = math.tanh %137 : vector<8x64xf32>
    %139 = arith.mulf %134, %138 : vector<8x64xf32>
    %c4_i32 = arith.constant 4 : i32
    %c0_44 = arith.constant 0 : index
    %c0_45 = arith.constant 0 : index
    %140 = vector.load %arg9[%c0_44, %c0_45] : memref<8x64xf32, #tpu.memory_space<vmem>>, vector<8x64xf32>
    tpu.vector_store %arg9[%c0_44, %c0_45], %139 {strides = array<i32>} : memref<8x64xf32, #tpu.memory_space<vmem>>, vector<8x64xf32>,
    %c0_46 = arith.constant 0 : index
    %c0_47 = arith.constant 0 : index
    %141 = vector.load %arg10[%c0_46, %c0_47] : memref<8x64xf32, #tpu.memory_space<vmem>>, vector<8x64xf32>
    tpu.vector_store %arg10[%c0_46, %c0_47], %137 {strides = array<i32>} : memref<8x64xf32, #tpu.memory_space<vmem>>, vector<8x64xf32>,
    %c1_i32_48 = arith.constant 1 : i32
    %142 = arith.cmpi eq, %arg0, %c1_i32_48 : i32
    %143 = arith.extui %142 : i1 to i32
    %c0_i32_49 = arith.constant 0 : i32
    %144 = arith.cmpi ne, %143, %c0_i32_49 : i32
    scf.if %144 {
      %c0_50 = arith.constant 0 : index
      %c0_51 = arith.constant 0 : index
      %145 = vector.load %arg5[%c0_50, %c0_51] : memref<64x128xf32, #tpu.memory_space<vmem>>, vector<64x128xf32>
      %cst_52 = arith.constant dense<0.000000e+00> : vector<8x128xf32>
      %146 = tpu.matmul %139, %145, %cst_52 {dimension_numbers = #tpu.dot_dimension_numbers<[1], [0], [0], [1], [0, 0, 1, 1], [], []>} : vector<8x64xf32>, vector<64x128xf32>, vector<8x128xf32> -> vector<8x128xf32>
      %c0_53 = arith.constant 0 : index
      %c0_54 = arith.constant 0 : index
      %147 = vector.load %arg6[%c0_53, %c0_54] : memref<1x128xf32, #tpu.memory_space<vmem>>, vector<1x128xf32>
      %148 = vector.broadcast %147 : vector<1x128xf32> to vector<8x128xf32>
      %149 = arith.addf %146, %148 : vector<8x128xf32>
      %c0_55 = arith.constant 0 : index
      %c0_56 = arith.constant 0 : index
      %150 = vector.load %arg7[%c0_55, %c0_56] : memref<8x128xf32, #tpu.memory_space<vmem>>, vector<8x128xf32>
      tpu.vector_store %arg7[%c0_55, %c0_56], %149 {strides = array<i32>} : memref<8x128xf32, #tpu.memory_space<vmem>>, vector<8x128xf32>,
    } else {
    }
    return
  }
  func.func @transform_0(%arg0: i32) -> (i32, i32) {
    %c0_i32 = arith.constant 0 : i32
    %c0_i32_0 = arith.constant 0 : i32
    return %arg0, %c0_i32 : i32, i32
  }
  func.func @transform_1(%arg0: i32) -> (i32, i32) {
    %c0_i32 = arith.constant 0 : i32
    %c0_i32_0 = arith.constant 0 : i32
    %c0_i32_1 = arith.constant 0 : i32
    return %c0_i32, %c0_i32_0 : i32, i32
  }
  func.func @transform_2(%arg0: i32) -> (i32, i32) {
    %c0_i32 = arith.constant 0 : i32
    %c0_i32_0 = arith.constant 0 : i32
    %c0_i32_1 = arith.constant 0 : i32
    return %c0_i32, %c0_i32_0 : i32, i32
  }
  func.func @transform_3(%arg0: i32) -> (i32, i32) {
    %c0_i32 = arith.constant 0 : i32
    %c0_i32_0 = arith.constant 0 : i32
    %c0_i32_1 = arith.constant 0 : i32
    return %c0_i32, %c0_i32_0 : i32, i32
  }
  func.func @transform_4(%arg0: i32) -> (i32, i32) {
    %c0_i32 = arith.constant 0 : i32
    %c0_i32_0 = arith.constant 0 : i32
    %c0_i32_1 = arith.constant 0 : i32
    return %c0_i32, %c0_i32_0 : i32, i32
  }
  func.func @transform_5(%arg0: i32) -> (i32, i32) {
    %c0_i32 = arith.constant 0 : i32
    %c0_i32_0 = arith.constant 0 : i32
    %c0_i32_1 = arith.constant 0 : i32
    return %c0_i32, %c0_i32_0 : i32, i32
  }
  func.func @transform_6(%arg0: i32) -> (i32, i32) {
    %c0_i32 = arith.constant 0 : i32
    %c0_i32_0 = arith.constant 0 : i32
    %c0_i32_1 = arith.constant 0 : i32
    return %c0_i32, %c0_i32_0 : i32, i32
  }
}

</mosaic_0001>

<llo_original>
// kernel: tpu_custom_call.1
$region0: #{tpu_custom_call.1}
  #allocation0 [shape = 'u32[]', space=smem, size = 0x4, offset = 0x4, fixed_abs, tag = 'smem constant byte address 0x4 - core index']
  #allocation1 [shape = 'u32[144,128]{1,0:T(1,128)}', space=vmem, size = 0x12000, scoped, tag = 'internal scratch']
  #allocation2 [shape = 'f32[32,256]{1,0:T(8,128)}', space=vmem, size = 0x8000, scoped, tag = 'scratch operand']
  #allocation3 [shape = 'f32[8,64]{1,0:T(8,128)}', space=vmem, size = 0x1000, scoped, tag = 'scratch operand']
  #allocation4 [shape = 'f32[8,64]{1,0:T(8,128)}', space=vmem, size = 0x1000, scoped, tag = 'scratch operand']
  %s0 = inlined_call_operand.hbm [shape: f32[64,128], index: 0, kind: input, shape index: {}]
  %s1 = inlined_call_operand.hbm [shape: f32[128,256], index: 1, kind: input, shape index: {}]
  %s2 = inlined_call_operand.hbm [shape: f32[64,256], index: 2, kind: input, shape index: {}]
  %s3 = inlined_call_operand.vmem [shape: f32[1,256], index: 3, kind: input, shape index: {}]
  %s4 = inlined_call_operand.hbm [shape: f32[64,128], index: 4, kind: input, shape index: {}]
  %s5 = inlined_call_operand.vmem [shape: f32[1,128], index: 5, kind: input, shape index: {}]
  %s6 = inlined_call_operand.hbm [shape: f32[8,128], index: 6, kind: output, shape index: {}]
  %s7 = sld [smem:[#allocation0]]
  $region81: #{tpu_custom_call.1} parent=0
    _
  %s9 = ssub.s32 1, %s7
  %s10 = scalar_select 0, %s9, %s7
  $region1: #{tpu_custom_call.1} parent=0
    #allocation5 [shape = 'u8[32768]{0}', space=vmem, size = 0x8000, scoped, tag = 'input window, operand 0']
    #allocation6 [shape = 's32[2]{0}', space=sflag, size = 0x8, scoped, tag = 'scoped memory for tpu_custom_call.1']
    #allocation7 [shape = 's32[2]{0}', space=sflag, size = 0x8, scoped, tag = 'scoped memory for tpu_custom_call.1']
    #allocation8 [shape = 'u8[131072]{0}', space=vmem, size = 0x20000, scoped, tag = 'input window, operand 1, single buffered']
    #allocation9 [shape = 's32[1]{0}', space=sflag, size = 0x4, scoped, tag = 'scoped memory for tpu_custom_call.1']
    #allocation10 [shape = 'u8[65536]{0}', space=vmem, size = 0x10000, scoped, tag = 'input window, operand 2, single buffered']
    #allocation11 [shape = 'u8[32768]{0}', space=vmem, size = 0x8000, scoped, tag = 'input window, operand 4, single buffered']
    #allocation12 [shape = 's32[1]{0}', space=sflag, size = 0x4, scoped, tag = 'scoped memory for tpu_custom_call.1']
    #allocation13 [shape = 'u8[4096]{0}', space=vmem, size = 0x1000, scoped, tag = 'output window, operand 0, single buffered']
    %11 = vsyncpa [#allocation6], 0
    %s12 = scalar_lea.sflag [#allocation6], 1
    %13 = vsyncpa %s12, 0
    %14 = vsyncpa [#allocation9], 0
    %15 = vsyncpa [#allocation12], 0
    %16 = vsyncpa [#allocation7], 0
    loop: start=0, step=1, limit=4
    $region2: #{tpu_custom_call.1} parent=1 // loop_pre_header
      _
    $region3: #{tpu_custom_call.1} parent=1 // loop_header
      %s18 = sphi 0, %s22
      %p19 = scmp.ge.s32.totalorder %s18, 4
      %s28 = sphi 0, %s30
      %s31 = sphi 0, %s28
      %s32 = sphi 0, %s31
      %s48 = sphi 0, %s32
      %s52 = sphi 0, %s52
      %s54 = sphi 0, %s52
      %s55 = sphi 0, %s54
      %s69 = sphi 0, %s55
      %s73 = sphi 0, %s73
      %s75 = sphi 0, %s73
      %s76 = sphi 0, %s75
      %s90 = sphi 0, %s76
      %s94 = sphi 0, %s94
      %s96 = sphi 0, %s94
      %s97 = sphi 0, %s96
      %s111 = sphi 0, %s97
      %s115 = sphi 0, %s115
      %s117 = sphi 0, %s115
      %s118 = sphi 0, %s117
      %s132 = sphi 0, %s118
      %s136 = sphi 0, %s136
      %s138 = sphi 0, %s136
      %s139 = sphi 0, %s138
      %s153 = sphi 0, %s139
      %s157 = sphi 0, %s157
      %s159 = sphi 0, %s157
      %s160 = sphi 0, %s159
      %s174 = sphi 0, %s160
    $region4: #{tpu_custom_call.1} parent=1 // loop_header_branch
      %21 = sbr.rel (%p19) target = $region8
    $region5: #{tpu_custom_call.1} parent=1 // loop_body
      %s23 = ssub.s32 %s18, 1
      %s24 = ssub.s32 %s18, 2
      %s25 = sadd.s32 %s18, 1
      %s26 = ssub.s32 %s18, %s25
      %p27 = scmp.eq.s32.totalorder %s26, 0
      %s29 = sadd.s32 %s28, 1
      %s30 = scalar_select %p27, %s28, %s29
      %p33 = pneg %p27
      %p34 = scmp.eq.s32.totalorder %s18, 1
      %p35 = por %p33, %p34
      %p36 = scmp.ne.s32.totalorder %s28, %s31
      %p37 = scmp.eq.s32.totalorder %s18, 0
      %p38 = por %p36, %p37
      %p39 = scmp.ne.s32.totalorder %s28, %s31
      %p40 = scmp.eq.s32.totalorder %s23, 1
      %p41 = por %p39, %p40
      %p42 = scmp.ne.s32.totalorder %s31, %s32
      %p43 = scmp.eq.s32.totalorder %s23, 0
      %p44 = por %p42, %p43
      %p45 = scmp.ne.s32.totalorder %s31, %s32
      %p46 = scmp.eq.s32.totalorder %s24, 1
      %p47 = por %p45, %p46
      %p49 = scmp.ne.s32.totalorder %s32, %s48
      %p50 = scmp.eq.s32.totalorder %s24, 0
      %p51 = por %p49, %p50
      %s53 = sadd.s32 %s52, 1
      %p56 = scmp.eq.s32.totalorder %s18, 1
      %p57 = scmp.ne.s32.totalorder %s52, %s54
      %p58 = scmp.eq.s32.totalorder %s18, 0
      %p59 = por %p57, %p58
      %p60 = scmp.ne.s32.totalorder %s52, %s54
      %p61 = scmp.eq.s32.totalorder %s23, 1
      %p62 = por %p60, %p61
      %p63 = scmp.ne.s32.totalorder %s54, %s55
      %p64 = scmp.eq.s32.totalorder %s23, 0
      %p65 = por %p63, %p64
      %p66 = scmp.ne.s32.totalorder %s54, %s55
      %p67 = scmp.eq.s32.totalorder %s24, 1
      %p68 = por %p66, %p67
      %p70 = scmp.ne.s32.totalorder %s55, %s69
      %p71 = scmp.eq.s32.totalorder %s24, 0
      %p72 = por %p70, %p71
      %s74 = sadd.s32 %s73, 1
      %p77 = scmp.eq.s32.totalorder %s18, 1
      %p78 = scmp.ne.s32.totalorder %s73, %s75
      %p79 = scmp.eq.s32.totalorder %s18, 0
      %p80 = por %p78, %p79
      %p81 = scmp.ne.s32.totalorder %s73, %s75
      %p82 = scmp.eq.s32.totalorder %s23, 1
      %p83 = por %p81, %p82
      %p84 = scmp.ne.s32.totalorder %s75, %s76
      %p85 = scmp.eq.s32.totalorder %s23, 0
      %p86 = por %p84, %p85
      %p87 = scmp.ne.s32.totalorder %s75, %s76
      %p88 = scmp.eq.s32.totalorder %s24, 1
      %p89 = por %p87, %p88
      %p91 = scmp.ne.s32.totalorder %s76, %s90
      %p92 = scmp.eq.s32.totalorder %s24, 0
      %p93 = por %p91, %p92
      %s95 = sadd.s32 %s94, 1
      %p98 = scmp.eq.s32.totalorder %s18, 1
      %p99 = scmp.ne.s32.totalorder %s94, %s96
      %p100 = scmp.eq.s32.totalorder %s18, 0
      %p101 = por %p99, %p100
      %p102 = scmp.ne.s32.totalorder %s94, %s96
      %p103 = scmp.eq.s32.totalorder %s23, 1
      %p104 = por %p102, %p103
      %p105 = scmp.ne.s32.totalorder %s96, %s97
      %p106 = scmp.eq.s32.totalorder %s23, 0
      %p107 = por %p105, %p106
      %p108 = scmp.ne.s32.totalorder %s96, %s97
      %p109 = scmp.eq.s32.totalorder %s24, 1
      %p110 = por %p108, %p109
      %p112 = scmp.ne.s32.totalorder %s97, %s111
      %p113 = scmp.eq.s32.totalorder %s24, 0
      %p114 = por %p112, %p113
      %s116 = sadd.s32 %s115, 1
      %p119 = scmp.eq.s32.totalorder %s18, 1
      %p120 = scmp.ne.s32.totalorder %s115, %s117
      %p121 = scmp.eq.s32.totalorder %s18, 0
      %p122 = por %p120, %p121
      %p123 = scmp.ne.s32.totalorder %s115, %s117
      %p124 = scmp.eq.s32.totalorder %s23, 1
      %p125 = por %p123, %p124
      %p126 = scmp.ne.s32.totalorder %s117, %s118
      %p127 = scmp.eq.s32.totalorder %s23, 0
      %p128 = por %p126, %p127
      %p129 = scmp.ne.s32.totalorder %s117, %s118
      %p130 = scmp.eq.s32.totalorder %s24, 1
      %p131 = por %p129, %p130
      %p133 = scmp.ne.s32.totalorder %s118, %s132
      %p134 = scmp.eq.s32.totalorder %s24, 0
      %p135 = por %p133, %p134
      %s137 = sadd.s32 %s136, 1
      %p140 = scmp.eq.s32.totalorder %s18, 1
      %p141 = scmp.ne.s32.totalorder %s136, %s138
      %p142 = scmp.eq.s32.totalorder %s18, 0
      %p143 = por %p141, %p142
      %p144 = scmp.ne.s32.totalorder %s136, %s138
      %p145 = scmp.eq.s32.totalorder %s23, 1
      %p146 = por %p144, %p145
      %p147 = scmp.ne.s32.totalorder %s138, %s139
      %p148 = scmp.eq.s32.totalorder %s23, 0
      %p149 = por %p147, %p148
      %p150 = scmp.ne.s32.totalorder %s138, %s139
      %p151 = scmp.eq.s32.totalorder %s24, 1
      %p152 = por %p150, %p151
      %p154 = scmp.ne.s32.totalorder %s139, %s153
      %p155 = scmp.eq.s32.totalorder %s24, 0
      %p156 = por %p154, %p155
      %s158 = sadd.s32 %s157, 1
      %p161 = scmp.eq.s32.totalorder %s18, 1
      %p162 = scmp.ne.s32.totalorder %s157, %s159
      %p163 = scmp.eq.s32.totalorder %s18, 0
      %p164 = por %p162, %p163
      %p165 = scmp.ne.s32.totalorder %s157, %s159
      %p166 = scmp.eq.s32.totalorder %s23, 1
      %p167 = por %p165, %p166
      %p168 = scmp.ne.s32.totalorder %s159, %s160
      %p169 = scmp.eq.s32.totalorder %s23, 0
      %p170 = por %p168, %p169
      %p171 = scmp.ne.s32.totalorder %s159, %s160
      %p172 = scmp.eq.s32.totalorder %s24, 1
      %p173 = por %p171, %p172
      %p175 = scmp.ne.s32.totalorder %s160, %s174
      %p176 = scmp.eq.s32.totalorder %s24, 0
      %p177 = por %p175, %p176
      %p178 = scmp.le.s32.totalorder 1, %s18
      %p179 = scmp.lt.s32.totalorder %s18, 3
      %p180 = pnand %p178, %p179
      %p181 = pneg %p180
      // Predicated region
      $region9: #{tpu_custom_call.1} parent=5 // pred_check
        _
      $region10: #{tpu_custom_call.1} parent=5 // pred_check_branch
        %183 = sbr.rel (%p180) target = $region12
      $region11: #{tpu_custom_call.1} parent=5 // pred_region
        %s184 = ssub.s32 %s18, 1
        // Predicated region
        $region13: #{tpu_custom_call.1} parent=11 // pred_check
          %p185 = pneg %p65
        $region14: #{tpu_custom_call.1} parent=11 // pred_check_branch
          %187 = sbr.rel (%p185) target = $region16
        $region15: #{tpu_custom_call.1} parent=11 // pred_region
          %s189 = ssub.s32 4096, 4096
          %190 = vsyncadd [#allocation9], %s189
          %s191 = sshll.u32 [#allocation8], 4
          %s192 = int_to_ptr.vmem [resolvable:$true] %s191
          %197 = dma.hbm_to_vmem [thread:$0]  %s1, 4096, %s192, [#allocation9], 256, 256, 16
        $region16: #{tpu_custom_call.1} parent=11 // pred_fallthru
          _
        // Predicated region
        $region17: #{tpu_custom_call.1} parent=11 // pred_check
          %p198 = pneg %p86
        $region18: #{tpu_custom_call.1} parent=11 // pred_check_branch
          %200 = sbr.rel (%p198) target = $region20
        $region19: #{tpu_custom_call.1} parent=11 // pred_region
          %s202 = ssub.s32 2048, 2048
          %203 = vsyncadd [#allocation9], %s202
          %s204 = sshll.u32 [#allocation10], 4
          %s205 = int_to_ptr.vmem [resolvable:$true] %s204
          %210 = dma.hbm_to_vmem [thread:$0]  %s2, 2048, %s205, [#allocation9], 256, 256, 16
        $region20: #{tpu_custom_call.1} parent=11 // pred_fallthru
          _
        // Predicated region
        $region21: #{tpu_custom_call.1} parent=11 // pred_check
          %p211 = pneg %p107
        $region22: #{tpu_custom_call.1} parent=11 // pred_check_branch
          %213 = sbr.rel (%p211) target = $region24
        $region23: #{tpu_custom_call.1} parent=11 // pred_region
          _
        $region24: #{tpu_custom_call.1} parent=11 // pred_fallthru
          _
        // Predicated region
        $region25: #{tpu_custom_call.1} parent=11 // pred_check
          %p214 = pneg %p128
        $region26: #{tpu_custom_call.1} parent=11 // pred_check_branch
          %216 = sbr.rel (%p214) target = $region28
        $region27: #{tpu_custom_call.1} parent=11 // pred_region
          %s218 = ssub.s32 1024, 1024
          %219 = vsyncadd [#allocation12], %s218
          %s220 = sshll.u32 [#allocation11], 4
          %s221 = int_to_ptr.vmem [resolvable:$true] %s220
          %226 = dma.hbm_to_vmem [thread:$0]  %s4, 1024, %s221, [#allocation12], 128, 128, 8
        $region28: #{tpu_custom_call.1} parent=11 // pred_fallthru
          _
        // Predicated region
        $region29: #{tpu_custom_call.1} parent=11 // pred_check
          %p227 = pneg %p149
        $region30: #{tpu_custom_call.1} parent=11 // pred_check_branch
          %229 = sbr.rel (%p227) target = $region32
        $region31: #{tpu_custom_call.1} parent=11 // pred_region
          _
        $region32: #{tpu_custom_call.1} parent=11 // pred_fallthru
          _
      $region12: #{tpu_custom_call.1} parent=5 // pred_fallthru
        _
      %p230 = scmp.lt.s32.totalorder %s18, 2
      // Predicated region
      $region33: #{tpu_custom_call.1} parent=5 // pred_check
        %p231 = pneg %p230
      $region34: #{tpu_custom_call.1} parent=5 // pred_check_branch
        %233 = sbr.rel (%p231) target = $region36
      $region35: #{tpu_custom_call.1} parent=5 // pred_region
        // Predicated region
        $region37: #{tpu_custom_call.1} parent=35 // pred_check
          %p234 = pneg %p38
        $region38: #{tpu_custom_call.1} parent=35 // pred_check_branch
          %236 = sbr.rel (%p234) target = $region40
        $region39: #{tpu_custom_call.1} parent=35 // pred_region
          %s237 = sand.u32 %s28, 1
          %s238 = scalar_lea.sflag [#allocation6], %s237
          %s239 = sand.u32 %s28, 1
          %s240 = smul.addr %s239, 32
          %s241 = scalar_lea.vmem [#allocation5], %s240
          %s242 = smul.u32 4, %s18
          %s244 = ssub.s32 512, 512
          %245 = vsyncadd %s238, %s244
          %s246 = smul.addr %s242, 128
          %s247 = scalar_lea.hbm %s0, %s246
          %s248 = sshll.u32 %s241, 4
          %s249 = int_to_ptr.vmem [resolvable:$true] %s248
          %254 = dma.hbm_to_vmem [thread:$0]  %s247, 512, %s249, %s238, 128, 128, 8
        $region40: #{tpu_custom_call.1} parent=35 // pred_fallthru
          _
      $region36: #{tpu_custom_call.1} parent=5 // pred_fallthru
        _
      %p255 = scmp.le.s32.totalorder 1, %s18
      %p256 = scmp.lt.s32.totalorder %s18, 3
      %p257 = pnand %p255, %p256
      %p258 = pneg %p257
      // Predicated region
      $region41: #{tpu_custom_call.1} parent=5 // pred_check
        _
      $region42: #{tpu_custom_call.1} parent=5 // pred_check_branch
        %260 = sbr.rel (%p257) target = $region44
      $region43: #{tpu_custom_call.1} parent=5 // pred_region
        %s261 = ssub.s32 %s18, 1
        %s262 = sand.u32 %s31, 1
        %s263 = scalar_lea.sflag [#allocation6], %s262
        %s264 = sand.u32 %s31, 1
        %s265 = smul.addr %s264, 32
        %s266 = scalar_lea.vmem [#allocation5], %s265
        // Predicated region
        $region45: #{tpu_custom_call.1} parent=43 // pred_check
          %p267 = pneg %p44
        $region46: #{tpu_custom_call.1} parent=43 // pred_check_branch
          %269 = sbr.rel (%p267) target = $region48
        $region47: #{tpu_custom_call.1} parent=43 // pred_region
          %270 = dma.done %s263, 512
        $region48: #{tpu_custom_call.1} parent=43 // pred_fallthru
          _
        // Predicated region
        $region49: #{tpu_custom_call.1} parent=43 // pred_check
          %p271 = pneg %p65
        $region50: #{tpu_custom_call.1} parent=43 // pred_check_branch
          %273 = sbr.rel (%p271) target = $region52
        $region51: #{tpu_custom_call.1} parent=43 // pred_region
          %274 = dma.done [#allocation9], 4096
        $region52: #{tpu_custom_call.1} parent=43 // pred_fallthru
          _
        // Predicated region
        $region53: #{tpu_custom_call.1} parent=43 // pred_check
          %p275 = pneg %p86
        $region54: #{tpu_custom_call.1} parent=43 // pred_check_branch
          %277 = sbr.rel (%p275) target = $region56
        $region55: #{tpu_custom_call.1} parent=43 // pred_region
          %278 = dma.done [#allocation9], 2048
        $region56: #{tpu_custom_call.1} parent=43 // pred_fallthru
          _
        // Predicated region
        $region57: #{tpu_custom_call.1} parent=43 // pred_check
          %p279 = pneg %p128
        $region58: #{tpu_custom_call.1} parent=43 // pred_check_branch
          %281 = sbr.rel (%p279) target = $region60
        $region59: #{tpu_custom_call.1} parent=43 // pred_region
          %282 = dma.done [#allocation12], 1024
        $region60: #{tpu_custom_call.1} parent=43 // pred_fallthru
          _
        %s283 = sand.u32 %s31, 1
        %s284 = scalar_lea.sflag [#allocation6], %s283
        %s285 = sand.u32 %s31, 1
        %s286 = smul.addr %s285, 32
        %s287 = scalar_lea.vmem [#allocation5], %s286
        %p288 = pneg %p44
        %p289 = pneg %p41
        %p290 = pneg %p65
        %p291 = pneg %p62
        %p292 = pneg %p86
        %p293 = pneg %p83
        %p294 = pneg %p107
        %p295 = pneg %p104
        %p296 = pneg %p128
        %p297 = pneg %p125
        %p298 = pneg %p149
        %p299 = pneg %p146
        %p300 = pneg %p170
        %p301 = pneg %p167
        %s302 = smul.u32 4, %s23
        %p303 = scmp.eq.s32.totalorder %s23, 0
        // Predicated region
        $region61: #{tpu_custom_call.1} parent=43 // pred_check
          %p304 = pneg %p303
        $region62: #{tpu_custom_call.1} parent=43 // pred_check_branch
          %306 = sbr.rel (%p304) target = $region64
        $region63: #{tpu_custom_call.1} parent=43 // pred_region
          %vm307 = vcmask 523264
          %308 = vst.msk [vmem:[#allocation3] sm:$0xff] %vm307, 0.0
          %309 = vst.msk [vmem:[#allocation4] sm:$0xff] %vm307, 0.0
        $region64: #{tpu_custom_call.1} parent=43 // pred_fallthru
          _
        %v310 = vld [vmem:[%s266] sm:$0xff]
        %v311 = vld [vmem:[%s266 + $0x8] sm:$0xff]
        %v312 = vld [vmem:[%s266 + $0x10] sm:$0xff]
        %v313 = vld [vmem:[%s266 + $0x18] sm:$0xff]
        %v314 = vld [vmem:[#allocation8] sm:$0xff]
        %v315 = vld [vmem:[#allocation8 + $0x8] sm:$0xff]
        %v316 = vld [vmem:[#allocation8 + $0x10] sm:$0xff]
        %v317 = vld [vmem:[#allocation8 + $0x18] sm:$0xff]
        %v318 = vld [vmem:[#allocation8 + $0x20] sm:$0xff]
        %v319 = vld [vmem:[#allocation8 + $0x28] sm:$0xff]
        %v320 = vld [vmem:[#allocation8 + $0x30] sm:$0xff]
        %v321 = vld [vmem:[#allocation8 + $0x38] sm:$0xff]
        %v322 = vld [vmem:[#allocation8 + $0x40] sm:$0xff]
        %v323 = vld [vmem:[#allocation8 + $0x48] sm:$0xff]
        %v324 = vld [vmem:[#allocation8 + $0x50] sm:$0xff]
        %v325 = vld [vmem:[#allocation8 + $0x58] sm:$0xff]
        %v326 = vld [vmem:[#allocation8 + $0x60] sm:$0xff]
        %v327 = vld [vmem:[#allocation8 + $0x68] sm:$0xff]
        %v328 = vld [vmem:[#allocation8 + $0x70] sm:$0xff]
        %v329 = vld [vmem:[#allocation8 + $0x78] sm:$0xff]
        %v330 = vld [vmem:[#allocation8 + $0x80] sm:$0xff]
        %v331 = vld [vmem:[#allocation8 + $0x88] sm:$0xff]
        %v332 = vld [vmem:[#allocation8 + $0x90] sm:$0xff]
        %v333 = vld [vmem:[#allocation8 + $0x98] sm:$0xff]
        %v334 = vld [vmem:[#allocation8 + $0xa0] sm:$0xff]
        %v335 = vld [vmem:[#allocation8 + $0xa8] sm:$0xff]
        %v336 = vld [vmem:[#allocation8 + $0xb0] sm:$0xff]
        %v337 = vld [vmem:[#allocation8 + $0xb8] sm:$0xff]
        %v338 = vld [vmem:[#allocation8 + $0xc0] sm:$0xff]
        %v339 = vld [vmem:[#allocation8 + $0xc8] sm:$0xff]
        %v340 = vld [vmem:[#allocation8 + $0xd0] sm:$0xff]
        %v341 = vld [vmem:[#allocation8 + $0xd8] sm:$0xff]
        %v342 = vld [vmem:[#allocation8 + $0xe0] sm:$0xff]
        %v343 = vld [vmem:[#allocation8 + $0xe8] sm:$0xff]
        %v344 = vld [vmem:[#allocation8 + $0xf0] sm:$0xff]
        %v345 = vld [vmem:[#allocation8 + $0xf8] sm:$0xff]
        %v346 = vld [vmem:[%s3] sm:$0x3]
        %v348 = vlaneseq
        %v349 = vshrl.u32 %v348, 7
        %v350 = vsub.s32 0, %v349
        %v351 = vrot.slane %v346, %v350
        %v352 = vlaneseq
        %v353 = vshrl.u32 %v352, 7
        %v354 = vsub.s32 1, %v353
        %v355 = vrot.slane %v346, %v354
        %358 = vmatprep.subr.mxu0 %v315
        %359 = vmatpush1.msra.mxu0 %v314
        %360 = vmatprep.subr.mxu0 %v317
        %361 = vmatpush1.msra.mxu0 %v316
        %362 = vmatprep.subr.mxu0 %v319
        %363 = vmatpush1.msra.mxu0 %v318
        %364 = vmatprep.subr.mxu0 %v321
        %365 = vmatpush1.msra.mxu0 %v320
        %366 = vmatprep.subr.mxu0 %v323
        %367 = vmatpush1.msra.mxu0 %v322
        %368 = vmatprep.subr.mxu0 %v325
        %369 = vmatpush1.msra.mxu0 %v324
        %370 = vmatprep.subr.mxu0 %v327
        %371 = vmatpush1.msra.mxu0 %v326
        %372 = vmatprep.subr.mxu0 %v329
        %373 = vmatpush1.msra.mxu0 %v328
        %374 = vmatprep.subr.mxu0 %v331
        %375 = vmatpush1.msra.mxu0 %v330
        %376 = vmatprep.subr.mxu0 %v333
        %377 = vmatpush1.msra.mxu0 %v332
        %378 = vmatprep.subr.mxu0 %v335
        %379 = vmatpush1.msra.mxu0 %v334
        %380 = vmatprep.subr.mxu0 %v337
        %381 = vmatpush1.msra.mxu0 %v336
        %382 = vmatprep.subr.mxu0 %v339
        %383 = vmatpush1.msra.mxu0 %v338
        %384 = vmatprep.subr.mxu0 %v341
        %385 = vmatpush1.msra.mxu0 %v340
        %386 = vmatprep.subr.mxu0 %v343
        %387 = vmatpush1.msra.mxu0 %v342
        %388 = vmatprep.subr.mxu0 %v345
        %389 = vmatpush1.msra.mxu0 %v344
        %390 = vmatprep.subr.mxu0 0.0
        %391 = vmatpush1.msra.mxu0 0.0
        %392 = vmatprep.subr.mxu0 0.0
        %393 = vmatpush1.msra.mxu0 0.0
        %394 = vmatprep.subr.mxu0 0.0
        %395 = vmatpush1.msra.mxu0 0.0
        %396 = vmatprep.subr.mxu0 0.0
        %397 = vmatpush1.msra.mxu0 0.0
        %398 = vmatprep.subr.mxu0 0.0
        %399 = vmatpush1.msra.mxu0 0.0
        %400 = vmatprep.subr.mxu0 0.0
        %401 = vmatpush1.msra.mxu0 0.0
        %402 = vmatprep.subr.mxu0 0.0
        %403 = vmatpush1.msra.mxu0 0.0
        %404 = vmatprep.subr.mxu0 0.0
        %405 = vmatpush1.msra.mxu0 0.0
        %406 = vmatprep.subr.mxu0 0.0
        %407 = vmatpush1.msra.mxu0 0.0
        %408 = vmatprep.subr.mxu0 0.0
        %409 = vmatpush1.msra.mxu0 0.0
        %410 = vmatprep.subr.mxu0 0.0
        %411 = vmatpush1.msra.mxu0 0.0
        %412 = vmatprep.subr.mxu0 0.0
        %413 = vmatpush1.msra.mxu0 0.0
        %414 = vmatprep.subr.mxu0 0.0
        %415 = vmatpush1.msra.mxu0 0.0
        %416 = vmatprep.subr.mxu0 0.0
        %417 = vmatpush1.msra.mxu0 0.0
        %418 = vmatprep.subr.mxu0 0.0
        %419 = vmatpush1.msra.mxu0 0.0
        %420 = vmatprep.subr.mxu0 0.0
        %421 = vmatpush1.msra.mxu0 0.0
        %422 = vmatprep.mubr.f32.mxu0 0.0
        %423 = vmatmul.mubr.f32.gmra.mrb[0].mxu0 %v310
        %v424 = vpop.f32.mrb[0].mxu0
        %v425 = vadd.f32 %v351, %v424
        %v426 = vpop.f32.mrb[0].mxu0
        %v427 = vadd.f32 %v355, %v426
        %428 = vmatprep.mubr.f32.mxu0 0.0
        %429 = vmatmul.mubr.f32.gmra.mrb[0].mxu0 %v311
        %v430 = vpop.f32.mrb[0].mxu0
        %v431 = vadd.f32 %v351, %v430
        %v432 = vpop.f32.mrb[0].mxu0
        %v433 = vadd.f32 %v355, %v432
        %434 = vmatprep.mubr.f32.mxu0 0.0
        %435 = vmatmul.mubr.f32.gmra.mrb[0].mxu0 %v312
        %v436 = vpop.f32.mrb[0].mxu0
        %v437 = vadd.f32 %v351, %v436
        %v438 = vpop.f32.mrb[0].mxu0
        %v439 = vadd.f32 %v355, %v438
        %440 = vmatprep.mubr.f32.mxu0 0.0
        %441 = vmatmul.mubr.f32.gmra.mrb[0].mxu0 %v313
        %v442 = vpop.f32.mrb[0].mxu0
        %v443 = vadd.f32 %v351, %v442
        %v444 = vpop.f32.mrb[0].mxu0
        %v445 = vadd.f32 %v355, %v444
        %446 = vdwg.mxu0
        %447 = vst [vmem:[#allocation2] sm:$0xff] %v425
        %448 = vst [vmem:[#allocation2 + $0x8] sm:$0xff] %v427
        %449 = vst [vmem:[#allocation2 + $0x10] sm:$0xff] %v431
        %450 = vst [vmem:[#allocation2 + $0x18] sm:$0xff] %v433
        %451 = vst [vmem:[#allocation2 + $0x20] sm:$0xff] %v437
        %452 = vst [vmem:[#allocation2 + $0x28] sm:$0xff] %v439
        %453 = vst [vmem:[#allocation2 + $0x30] sm:$0xff] %v443
        %454 = vst [vmem:[#allocation2 + $0x38] sm:$0xff] %v445
        %v455 = vld [vmem:[#allocation3] sm:$0xff]
        %v456 = vld [vmem:[#allocation4] sm:$0xff]
        %s457 = smul.u32 0, 2
        %s458 = smul.addr %s457, 8
        %s459 = scalar_lea.vmem [#allocation2], %s458
        %v460 = vld [vmem:[%s459] sm:$0xff]
        %v461 = vld [vmem:[%s459 + $0x8] sm:$0xff]
        %v462 = vld [vmem:[#allocation10] sm:$0xff]
        %v463 = vld [vmem:[#allocation10 + $0x8] sm:$0xff]
        %v464 = vld [vmem:[#allocation10 + $0x10] sm:$0xff]
        %v465 = vld [vmem:[#allocation10 + $0x18] sm:$0xff]
        %v466 = vld [vmem:[#allocation10 + $0x20] sm:$0xff]
        %v467 = vld [vmem:[#allocation10 + $0x28] sm:$0xff]
        %v468 = vld [vmem:[#allocation10 + $0x30] sm:$0xff]
        %v469 = vld [vmem:[#allocation10 + $0x38] sm:$0xff]
        %v470 = vld [vmem:[#allocation10 + $0x40] sm:$0xff]
        %v471 = vld [vmem:[#allocation10 + $0x48] sm:$0xff]
        %v472 = vld [vmem:[#allocation10 + $0x50] sm:$0xff]
        %v473 = vld [vmem:[#allocation10 + $0x58] sm:$0xff]
        %v474 = vld [vmem:[#allocation10 + $0x60] sm:$0xff]
        %v475 = vld [vmem:[#allocation10 + $0x68] sm:$0xff]
        %v476 = vld [vmem:[#allocation10 + $0x70] sm:$0xff]
        %v477 = vld [vmem:[#allocation10 + $0x78] sm:$0xff]
        %vm478 = vcmask 523264
        %v480 = vsel %vm478, %v455, 0
        %482 = vmatprep.subr.mxu0 %v463
        %483 = vmatpush1.msra.mxu0 %v462
        %484 = vmatprep.subr.mxu0 %v465
        %485 = vmatpush1.msra.mxu0 %v464
        %486 = vmatprep.subr.mxu0 %v467
        %487 = vmatpush1.msra.mxu0 %v466
        %488 = vmatprep.subr.mxu0 %v469
        %489 = vmatpush1.msra.mxu0 %v468
        %490 = vmatprep.subr.mxu0 %v471
        %491 = vmatpush1.msra.mxu0 %v470
        %492 = vmatprep.subr.mxu0 %v473
        %493 = vmatpush1.msra.mxu0 %v472
        %494 = vmatprep.subr.mxu0 %v475
        %495 = vmatpush1.msra.mxu0 %v474
        %496 = vmatprep.subr.mxu0 %v477
        %497 = vmatpush1.msra.mxu0 %v476
        %498 = vmatprep.subr.mxu0 0.0
        %499 = vmatpush1.msra.mxu0 0.0
        %500 = vmatprep.subr.mxu0 0.0
        %501 = vmatpush1.msra.mxu0 0.0
        %502 = vmatprep.subr.mxu0 0.0
        %503 = vmatpush1.msra.mxu0 0.0
        %504 = vmatprep.subr.mxu0 0.0
        %505 = vmatpush1.msra.mxu0 0.0
        %506 = vmatprep.subr.mxu0 0.0
        %507 = vmatpush1.msra.mxu0 0.0
        %508 = vmatprep.subr.mxu0 0.0
        %509 = vmatpush1.msra.mxu0 0.0
        %510 = vmatprep.subr.mxu0 0.0
        %511 = vmatpush1.msra.mxu0 0.0
        %512 = vmatprep.subr.mxu0 0.0
        %513 = vmatpush1.msra.mxu0 0.0
        %514 = vmatprep.subr.mxu0 0.0
        %515 = vmatpush1.msra.mxu0 0.0
        %516 = vmatprep.subr.mxu0 0.0
        %517 = vmatpush1.msra.mxu0 0.0
        %518 = vmatprep.subr.mxu0 0.0
        %519 = vmatpush1.msra.mxu0 0.0
        %520 = vmatprep.subr.mxu0 0.0
        %521 = vmatpush1.msra.mxu0 0.0
        %522 = vmatprep.subr.mxu0 0.0
        %523 = vmatpush1.msra.mxu0 0.0
        %524 = vmatprep.subr.mxu0 0.0
        %525 = vmatpush1.msra.mxu0 0.0
        %526 = vmatprep.subr.mxu0 0.0
        %527 = vmatpush1.msra.mxu0 0.0
        %528 = vmatprep.subr.mxu0 0.0
        %529 = vmatpush1.msra.mxu0 0.0
        %530 = vmatprep.subr.mxu0 0.0
        %531 = vmatpush1.msra.mxu0 0.0
        %532 = vmatprep.subr.mxu0 0.0
        %533 = vmatpush1.msra.mxu0 0.0
        %534 = vmatprep.subr.mxu0 0.0
        %535 = vmatpush1.msra.mxu0 0.0
        %536 = vmatprep.subr.mxu0 0.0
        %537 = vmatpush1.msra.mxu0 0.0
        %538 = vmatprep.subr.mxu0 0.0
        %539 = vmatpush1.msra.mxu0 0.0
        %540 = vmatprep.subr.mxu0 0.0
        %541 = vmatpush1.msra.mxu0 0.0
        %542 = vmatprep.subr.mxu0 0.0
        %543 = vmatpush1.msra.mxu0 0.0
        %544 = vmatprep.subr.mxu0 0.0
        %545 = vmatpush1.msra.mxu0 0.0
        %546 = vmatprep.mubr.f32.mxu0 0.0
        %547 = vmatmul.mubr.f32.gmra.mrb[0].mxu0 %v480
        %v548 = vpop.f32.mrb[0].mxu0
        %v549 = vadd.f32 0.0, %v548
        %v550 = vpop.f32.mrb[0].mxu0
        %v551 = vadd.f32 0.0, %v550
        %552 = vdwg.mxu0
        %v553 = vadd.f32 %v460, %v549
        %v554 = vadd.f32 %v461, %v551
        %v555 = vxor.u32 %v553, 2147483648
        %v556 = vmul.f32 %v555, 1.442695
        %v557 = vpow.pop %v556
        %v558 = vadd.f32 %v557, 1.0
        %v559 = vrcp.pop %v558
        %v560 = vmul.f32 1.0, %v559
        %v561 = vtanh.pop %v554
        %v562 = vxor.u32 %v554, 2147483648
        %v563 = vmul.f32 %v562, 1.442695
        %v564 = vpow.pop %v563
        %v565 = vadd.f32 %v564, 1.0
        %v566 = vrcp.pop %v565
        %v567 = vmul.f32 1.0, %v566
        %569 = vrot.lane.b32.xlu0 %v456, 64
        %v570 = vpop.permute.xlu0 %569
        %v572 = vmul.f32 %v560, %v570
        %v573 = vmul.f32 %v560, %v561
        %575 = vrot.lane.b32.xlu0 %v573, 64
        %v576 = vpop.permute.xlu0 %575
        %v578 = vadd.f32 %v572, %v576
        %v579 = vtanh.pop %v578
        %v580 = vmul.f32 %v567, %v579
        %s581 = smul.u32 1, 2
        %s582 = smul.addr %s581, 8
        %s583 = scalar_lea.vmem [#allocation2], %s582
        %v584 = vld [vmem:[%s583] sm:$0xff]
        %v585 = vld [vmem:[%s583 + $0x8] sm:$0xff]
        %587 = vrot.lane.b32.xlu0 %v580, 64
        %v588 = vpop.permute.xlu0 %587
        %v589 = vsel %vm478, %v588, 0
        %591 = vmatprep.subr.mxu0 %v463
        %592 = vmatpush1.msra.mxu0 %v462
        %593 = vmatprep.subr.mxu0 %v465
        %594 = vmatpush1.msra.mxu0 %v464
        %595 = vmatprep.subr.mxu0 %v467
        %596 = vmatpush1.msra.mxu0 %v466
        %597 = vmatprep.subr.mxu0 %v469
        %598 = vmatpush1.msra.mxu0 %v468
        %599 = vmatprep.subr.mxu0 %v471
        %600 = vmatpush1.msra.mxu0 %v470
        %601 = vmatprep.subr.mxu0 %v473
        %602 = vmatpush1.msra.mxu0 %v472
        %603 = vmatprep.subr.mxu0 %v475
        %604 = vmatpush1.msra.mxu0 %v474
        %605 = vmatprep.subr.mxu0 %v477
        %606 = vmatpush1.msra.mxu0 %v476
        %607 = vmatprep.subr.mxu0 0.0
        %608 = vmatpush1.msra.mxu0 0.0
        %609 = vmatprep.subr.mxu0 0.0
        %610 = vmatpush1.msra.mxu0 0.0
        %611 = vmatprep.subr.mxu0 0.0
        %612 = vmatpush1.msra.mxu0 0.0
        %613 = vmatprep.subr.mxu0 0.0
        %614 = vmatpush1.msra.mxu0 0.0
        %615 = vmatprep.subr.mxu0 0.0
        %616 = vmatpush1.msra.mxu0 0.0
        %617 = vmatprep.subr.mxu0 0.0
        %618 = vmatpush1.msra.mxu0 0.0
        %619 = vmatprep.subr.mxu0 0.0
        %620 = vmatpush1.msra.mxu0 0.0
        %621 = vmatprep.subr.mxu0 0.0
        %622 = vmatpush1.msra.mxu0 0.0
        %623 = vmatprep.subr.mxu0 0.0
        %624 = vmatpush1.msra.mxu0 0.0
        %625 = vmatprep.subr.mxu0 0.0
        %626 = vmatpush1.msra.mxu0 0.0
        %627 = vmatprep.subr.mxu0 0.0
        %628 = vmatpush1.msra.mxu0 0.0
        %629 = vmatprep.subr.mxu0 0.0
        %630 = vmatpush1.msra.mxu0 0.0
        %631 = vmatprep.subr.mxu0 0.0
        %632 = vmatpush1.msra.mxu0 0.0
        %633 = vmatprep.subr.mxu0 0.0
        %634 = vmatpush1.msra.mxu0 0.0
        %635 = vmatprep.subr.mxu0 0.0
        %636 = vmatpush1.msra.mxu0 0.0
        %637 = vmatprep.subr.mxu0 0.0
        %638 = vmatpush1.msra.mxu0 0.0
        %639 = vmatprep.subr.mxu0 0.0
        %640 = vmatpush1.msra.mxu0 0.0
        %641 = vmatprep.subr.mxu0 0.0
        %642 = vmatpush1.msra.mxu0 0.0
        %643 = vmatprep.subr.mxu0 0.0
        %644 = vmatpush1.msra.mxu0 0.0
        %645 = vmatprep.subr.mxu0 0.0
        %646 = vmatpush1.msra.mxu0 0.0
        %647 = vmatprep.subr.mxu0 0.0
        %648 = vmatpush1.msra.mxu0 0.0
        %649 = vmatprep.subr.mxu0 0.0
        %650 = vmatpush1.msra.mxu0 0.0
        %651 = vmatprep.subr.mxu0 0.0
        %652 = vmatpush1.msra.mxu0 0.0
        %653 = vmatprep.subr.mxu0 0.0
        %654 = vmatpush1.msra.mxu0 0.0
        %655 = vmatprep.mubr.f32.mxu0 0.0
        %656 = vmatmul.mubr.f32.gmra.mrb[0].mxu0 %v589
        %v657 = vpop.f32.mrb[0].mxu0
        %v658 = vadd.f32 0.0, %v657
        %v659 = vpop.f32.mrb[0].mxu0
        %v660 = vadd.f32 0.0, %v659
        %661 = vdwg.mxu0
        %v662 = vadd.f32 %v584, %v658
        %v663 = vadd.f32 %v585, %v660
        %v664 = vxor.u32 %v662, 2147483648
        %v665 = vmul.f32 %v664, 1.442695
        %v666 = vpow.pop %v665
        %v667 = vadd.f32 %v666, 1.0
        %v668 = vrcp.pop %v667
        %v669 = vmul.f32 1.0, %v668
        %v670 = vtanh.pop %v663
        %v671 = vxor.u32 %v663, 2147483648
        %v672 = vmul.f32 %v671, 1.442695
        %v673 = vpow.pop %v672
        %v674 = vadd.f32 %v673, 1.0
        %v675 = vrcp.pop %v674
        %v676 = vmul.f32 1.0, %v675
        %v677 = vmul.f32 %v669, %v578
        %v678 = vmul.f32 %v669, %v670
        %680 = vrot.lane.b32.xlu0 %v678, 64
        %v681 = vpop.permute.xlu0 %680
        %v683 = vadd.f32 %v677, %v681
        %v684 = vtanh.pop %v683
        %v685 = vmul.f32 %v676, %v684
        %s686 = smul.u32 2, 2
        %s687 = smul.addr %s686, 8
        %s688 = scalar_lea.vmem [#allocation2], %s687
        %v689 = vld [vmem:[%s688] sm:$0xff]
        %v690 = vld [vmem:[%s688 + $0x8] sm:$0xff]
        %692 = vrot.lane.b32.xlu0 %v685, 64
        %v693 = vpop.permute.xlu0 %692
        %v694 = vsel %vm478, %v693, 0
        %696 = vmatprep.subr.mxu0 %v463
        %697 = vmatpush1.msra.mxu0 %v462
        %698 = vmatprep.subr.mxu0 %v465
        %699 = vmatpush1.msra.mxu0 %v464
        %700 = vmatprep.subr.mxu0 %v467
        %701 = vmatpush1.msra.mxu0 %v466
        %702 = vmatprep.subr.mxu0 %v469
        %703 = vmatpush1.msra.mxu0 %v468
        %704 = vmatprep.subr.mxu0 %v471
        %705 = vmatpush1.msra.mxu0 %v470
        %706 = vmatprep.subr.mxu0 %v473
        %707 = vmatpush1.msra.mxu0 %v472
        %708 = vmatprep.subr.mxu0 %v475
        %709 = vmatpush1.msra.mxu0 %v474
        %710 = vmatprep.subr.mxu0 %v477
        %711 = vmatpush1.msra.mxu0 %v476
        %712 = vmatprep.subr.mxu0 0.0
        %713 = vmatpush1.msra.mxu0 0.0
        %714 = vmatprep.subr.mxu0 0.0
        %715 = vmatpush1.msra.mxu0 0.0
        %716 = vmatprep.subr.mxu0 0.0
        %717 = vmatpush1.msra.mxu0 0.0
        %718 = vmatprep.subr.mxu0 0.0
        %719 = vmatpush1.msra.mxu0 0.0
        %720 = vmatprep.subr.mxu0 0.0
        %721 = vmatpush1.msra.mxu0 0.0
        %722 = vmatprep.subr.mxu0 0.0
        %723 = vmatpush1.msra.mxu0 0.0
        %724 = vmatprep.subr.mxu0 0.0
        %725 = vmatpush1.msra.mxu0 0.0
        %726 = vmatprep.subr.mxu0 0.0
        %727 = vmatpush1.msra.mxu0 0.0
        %728 = vmatprep.subr.mxu0 0.0
        %729 = vmatpush1.msra.mxu0 0.0
        %730 = vmatprep.subr.mxu0 0.0
        %731 = vmatpush1.msra.mxu0 0.0
        %732 = vmatprep.subr.mxu0 0.0
        %733 = vmatpush1.msra.mxu0 0.0
        %734 = vmatprep.subr.mxu0 0.0
        %735 = vmatpush1.msra.mxu0 0.0
        %736 = vmatprep.subr.mxu0 0.0
        %737 = vmatpush1.msra.mxu0 0.0
        %738 = vmatprep.subr.mxu0 0.0
        %739 = vmatpush1.msra.mxu0 0.0
        %740 = vmatprep.subr.mxu0 0.0
        %741 = vmatpush1.msra.mxu0 0.0
        %742 = vmatprep.subr.mxu0 0.0
        %743 = vmatpush1.msra.mxu0 0.0
        %744 = vmatprep.subr.mxu0 0.0
        %745 = vmatpush1.msra.mxu0 0.0
        %746 = vmatprep.subr.mxu0 0.0
        %747 = vmatpush1.msra.mxu0 0.0
        %748 = vmatprep.subr.mxu0 0.0
        %749 = vmatpush1.msra.mxu0 0.0
        %750 = vmatprep.subr.mxu0 0.0
        %751 = vmatpush1.msra.mxu0 0.0
        %752 = vmatprep.subr.mxu0 0.0
        %753 = vmatpush1.msra.mxu0 0.0
        %754 = vmatprep.subr.mxu0 0.0
        %755 = vmatpush1.msra.mxu0 0.0
        %756 = vmatprep.subr.mxu0 0.0
        %757 = vmatpush1.msra.mxu0 0.0
        %758 = vmatprep.subr.mxu0 0.0
        %759 = vmatpush1.msra.mxu0 0.0
        %760 = vmatprep.mubr.f32.mxu0 0.0
        %761 = vmatmul.mubr.f32.gmra.mrb[0].mxu0 %v694
        %v762 = vpop.f32.mrb[0].mxu0
        %v763 = vadd.f32 0.0, %v762
        %v764 = vpop.f32.mrb[0].mxu0
        %v765 = vadd.f32 0.0, %v764
        %766 = vdwg.mxu0
        %v767 = vadd.f32 %v689, %v763
        %v768 = vadd.f32 %v690, %v765
        %v769 = vxor.u32 %v767, 2147483648
        %v770 = vmul.f32 %v769, 1.442695
        %v771 = vpow.pop %v770
        %v772 = vadd.f32 %v771, 1.0
        %v773 = vrcp.pop %v772
        %v774 = vmul.f32 1.0, %v773
        %v775 = vtanh.pop %v768
        %v776 = vxor.u32 %v768, 2147483648
        %v777 = vmul.f32 %v776, 1.442695
        %v778 = vpow.pop %v777
        %v779 = vadd.f32 %v778, 1.0
        %v780 = vrcp.pop %v779
        %v781 = vmul.f32 1.0, %v780
        %v782 = vmul.f32 %v774, %v683
        %v783 = vmul.f32 %v774, %v775
        %785 = vrot.lane.b32.xlu0 %v783, 64
        %v786 = vpop.permute.xlu0 %785
        %v788 = vadd.f32 %v782, %v786
        %v789 = vtanh.pop %v788
        %v790 = vmul.f32 %v781, %v789
        %s791 = smul.u32 3, 2
        %s792 = smul.addr %s791, 8
        %s793 = scalar_lea.vmem [#allocation2], %s792
        %v794 = vld [vmem:[%s793] sm:$0xff]
        %v795 = vld [vmem:[%s793 + $0x8] sm:$0xff]
        %797 = vrot.lane.b32.xlu0 %v790, 64
        %v798 = vpop.permute.xlu0 %797
        %v799 = vsel %vm478, %v798, 0
        %801 = vmatprep.subr.mxu0 %v463
        %802 = vmatpush1.msra.mxu0 %v462
        %803 = vmatprep.subr.mxu0 %v465
        %804 = vmatpush1.msra.mxu0 %v464
        %805 = vmatprep.subr.mxu0 %v467
        %806 = vmatpush1.msra.mxu0 %v466
        %807 = vmatprep.subr.mxu0 %v469
        %808 = vmatpush1.msra.mxu0 %v468
        %809 = vmatprep.subr.mxu0 %v471
        %810 = vmatpush1.msra.mxu0 %v470
        %811 = vmatprep.subr.mxu0 %v473
        %812 = vmatpush1.msra.mxu0 %v472
        %813 = vmatprep.subr.mxu0 %v475
        %814 = vmatpush1.msra.mxu0 %v474
        %815 = vmatprep.subr.mxu0 %v477
        %816 = vmatpush1.msra.mxu0 %v476
        %817 = vmatprep.subr.mxu0 0.0
        %818 = vmatpush1.msra.mxu0 0.0
        %819 = vmatprep.subr.mxu0 0.0
        %820 = vmatpush1.msra.mxu0 0.0
        %821 = vmatprep.subr.mxu0 0.0
        %822 = vmatpush1.msra.mxu0 0.0
        %823 = vmatprep.subr.mxu0 0.0
        %824 = vmatpush1.msra.mxu0 0.0
        %825 = vmatprep.subr.mxu0 0.0
        %826 = vmatpush1.msra.mxu0 0.0
        %827 = vmatprep.subr.mxu0 0.0
        %828 = vmatpush1.msra.mxu0 0.0
        %829 = vmatprep.subr.mxu0 0.0
        %830 = vmatpush1.msra.mxu0 0.0
        %831 = vmatprep.subr.mxu0 0.0
        %832 = vmatpush1.msra.mxu0 0.0
        %833 = vmatprep.subr.mxu0 0.0
        %834 = vmatpush1.msra.mxu0 0.0
        %835 = vmatprep.subr.mxu0 0.0
        %836 = vmatpush1.msra.mxu0 0.0
        %837 = vmatprep.subr.mxu0 0.0
        %838 = vmatpush1.msra.mxu0 0.0
        %839 = vmatprep.subr.mxu0 0.0
        %840 = vmatpush1.msra.mxu0 0.0
        %841 = vmatprep.subr.mxu0 0.0
        %842 = vmatpush1.msra.mxu0 0.0
        %843 = vmatprep.subr.mxu0 0.0
        %844 = vmatpush1.msra.mxu0 0.0
        %845 = vmatprep.subr.mxu0 0.0
        %846 = vmatpush1.msra.mxu0 0.0
        %847 = vmatprep.subr.mxu0 0.0
        %848 = vmatpush1.msra.mxu0 0.0
        %849 = vmatprep.subr.mxu0 0.0
        %850 = vmatpush1.msra.mxu0 0.0
        %851 = vmatprep.subr.mxu0 0.0
        %852 = vmatpush1.msra.mxu0 0.0
        %853 = vmatprep.subr.mxu0 0.0
        %854 = vmatpush1.msra.mxu0 0.0
        %855 = vmatprep.subr.mxu0 0.0
        %856 = vmatpush1.msra.mxu0 0.0
        %857 = vmatprep.subr.mxu0 0.0
        %858 = vmatpush1.msra.mxu0 0.0
        %859 = vmatprep.subr.mxu0 0.0
        %860 = vmatpush1.msra.mxu0 0.0
        %861 = vmatprep.subr.mxu0 0.0
        %862 = vmatpush1.msra.mxu0 0.0
        %863 = vmatprep.subr.mxu0 0.0
        %864 = vmatpush1.msra.mxu0 0.0
        %865 = vmatprep.mubr.f32.mxu0 0.0
        %866 = vmatmul.mubr.f32.gmra.mrb[0].mxu0 %v799
        %v867 = vpop.f32.mrb[0].mxu0
        %v868 = vadd.f32 0.0, %v867
        %v869 = vpop.f32.mrb[0].mxu0
        %v870 = vadd.f32 0.0, %v869
        %871 = vdwg.mxu0
        %v872 = vadd.f32 %v794, %v868
        %v873 = vadd.f32 %v795, %v870
        %v874 = vxor.u32 %v872, 2147483648
        %v875 = vmul.f32 %v874, 1.442695
        %v876 = vpow.pop %v875
        %v877 = vadd.f32 %v876, 1.0
        %v878 = vrcp.pop %v877
        %v879 = vmul.f32 1.0, %v878
        %v880 = vtanh.pop %v873
        %v881 = vxor.u32 %v873, 2147483648
        %v882 = vmul.f32 %v881, 1.442695
        %v883 = vpow.pop %v882
        %v884 = vadd.f32 %v883, 1.0
        %v885 = vrcp.pop %v884
        %v886 = vmul.f32 1.0, %v885
        %v887 = vmul.f32 %v879, %v788
        %v888 = vmul.f32 %v879, %v880
        %890 = vrot.lane.b32.xlu0 %v888, 64
        %v891 = vpop.permute.xlu0 %890
        %v893 = vadd.f32 %v887, %v891
        %v894 = vtanh.pop %v893
        %v895 = vmul.f32 %v886, %v894
        %897 = vrot.lane.b32.xlu0 %v895, 64
        %v898 = vpop.permute.xlu0 %897
        %900 = vst.msk [vmem:[#allocation3] sm:$0xff] %vm478, %v898
        %902 = vrot.lane.b32.xlu0 %v893, 64
        %v903 = vpop.permute.xlu0 %902
        %905 = vst.msk [vmem:[#allocation4] sm:$0xff] %vm478, %v903
        %p906 = scmp.eq.s32.totalorder %s23, 1
        // Predicated region
        $region65: #{tpu_custom_call.1} parent=43 // pred_check
          %p907 = pneg %p906
        $region66: #{tpu_custom_call.1} parent=43 // pred_check_branch
          %909 = sbr.rel (%p907) target = $region68
        $region67: #{tpu_custom_call.1} parent=43 // pred_region
          %v910 = vld [vmem:[#allocation11] sm:$0xff]
          %v911 = vld [vmem:[#allocation11 + $0x8] sm:$0xff]
          %v912 = vld [vmem:[#allocation11 + $0x10] sm:$0xff]
          %v913 = vld [vmem:[#allocation11 + $0x18] sm:$0xff]
          %v914 = vld [vmem:[#allocation11 + $0x20] sm:$0xff]
          %v915 = vld [vmem:[#allocation11 + $0x28] sm:$0xff]
          %v916 = vld [vmem:[#allocation11 + $0x30] sm:$0xff]
          %v917 = vld [vmem:[#allocation11 + $0x38] sm:$0xff]
          %v918 = vld [vmem:[%s5] sm:$0x1]
          %v920 = vlaneseq
          %v921 = vshrl.u32 %v920, 7
          %v922 = vsub.s32 0, %v921
          %v923 = vrot.slane %v918, %v922
          %v925 = vsel %vm478, %v898, 0
          %927 = vmatprep.subr.mxu0 0.0
          %928 = vmatpush1.msra.mxu0 %v910
          %929 = vmatprep.subr.mxu0 0.0
          %930 = vmatpush1.msra.mxu0 %v911
          %931 = vmatprep.subr.mxu0 0.0
          %932 = vmatpush1.msra.mxu0 %v912
          %933 = vmatprep.subr.mxu0 0.0
          %934 = vmatpush1.msra.mxu0 %v913
          %935 = vmatprep.subr.mxu0 0.0
          %936 = vmatpush1.msra.mxu0 %v914
          %937 = vmatprep.subr.mxu0 0.0
          %938 = vmatpush1.msra.mxu0 %v915
          %939 = vmatprep.subr.mxu0 0.0
          %940 = vmatpush1.msra.mxu0 %v916
          %941 = vmatprep.subr.mxu0 0.0
          %942 = vmatpush1.msra.mxu0 %v917
          %943 = vmatprep.subr.mxu0 0.0
          %944 = vmatpush1.msra.mxu0 0.0
          %945 = vmatprep.subr.mxu0 0.0
          %946 = vmatpush1.msra.mxu0 0.0
          %947 = vmatprep.subr.mxu0 0.0
          %948 = vmatpush1.msra.mxu0 0.0
          %949 = vmatprep.subr.mxu0 0.0
          %950 = vmatpush1.msra.mxu0 0.0
          %951 = vmatprep.subr.mxu0 0.0
          %952 = vmatpush1.msra.mxu0 0.0
          %953 = vmatprep.subr.mxu0 0.0
          %954 = vmatpush1.msra.mxu0 0.0
          %955 = vmatprep.subr.mxu0 0.0
          %956 = vmatpush1.msra.mxu0 0.0
          %957 = vmatprep.subr.mxu0 0.0
          %958 = vmatpush1.msra.mxu0 0.0
          %959 = vmatprep.subr.mxu0 0.0
          %960 = vmatpush1.msra.mxu0 0.0
          %961 = vmatprep.subr.mxu0 0.0
          %962 = vmatpush1.msra.mxu0 0.0
          %963 = vmatprep.subr.mxu0 0.0
          %964 = vmatpush1.msra.mxu0 0.0
          %965 = vmatprep.subr.mxu0 0.0
          %966 = vmatpush1.msra.mxu0 0.0
          %967 = vmatprep.subr.mxu0 0.0
          %968 = vmatpush1.msra.mxu0 0.0
          %969 = vmatprep.subr.mxu0 0.0
          %970 = vmatpush1.msra.mxu0 0.0
          %971 = vmatprep.subr.mxu0 0.0
          %972 = vmatpush1.msra.mxu0 0.0
          %973 = vmatprep.subr.mxu0 0.0
          %974 = vmatpush1.msra.mxu0 0.0
          %975 = vmatprep.subr.mxu0 0.0
          %976 = vmatpush1.msra.mxu0 0.0
          %977 = vmatprep.subr.mxu0 0.0
          %978 = vmatpush1.msra.mxu0 0.0
          %979 = vmatprep.subr.mxu0 0.0
          %980 = vmatpush1.msra.mxu0 0.0
          %981 = vmatprep.subr.mxu0 0.0
          %982 = vmatpush1.msra.mxu0 0.0
          %983 = vmatprep.subr.mxu0 0.0
          %984 = vmatpush1.msra.mxu0 0.0
          %985 = vmatprep.subr.mxu0 0.0
          %986 = vmatpush1.msra.mxu0 0.0
          %987 = vmatprep.subr.mxu0 0.0
          %988 = vmatpush1.msra.mxu0 0.0
          %989 = vmatprep.subr.mxu0 0.0
          %990 = vmatpush1.msra.mxu0 0.0
          %991 = vmatprep.mubr.f32.mxu0 0.0
          %992 = vmatmul.mubr.f32.gmra.mrb[0].mxu0 %v925
          %v993 = vpop.f32.mrb[0].mxu0
          %v994 = vadd.f32 %v923, %v993
          %v995 = vpop.f32.mrb[0].mxu0
          %996 = vdwg.mxu0
          %997 = vst [vmem:[#allocation13] sm:$0xff] %v994
        $region68: #{tpu_custom_call.1} parent=43 // pred_fallthru
          _
        // Predicated region
        $region69: #{tpu_custom_call.1} parent=43 // pred_check
          %p998 = pneg %p167
        $region70: #{tpu_custom_call.1} parent=43 // pred_check_branch
          %1000 = sbr.rel (%p998) target = $region72
        $region71: #{tpu_custom_call.1} parent=43 // pred_region
          %s1002 = ssub.s32 128, 128
          %1003 = vsyncadd [#allocation7], %s1002
          %s1005 = sshll.u32 [#allocation13], 4
          %s1006 = int_to_ptr.vmem [resolvable:$true] %s1005
          %1008 = dma.vmem_to_hbm [thread:$0]  %s1006, 128, %s6, [#allocation7]
        $region72: #{tpu_custom_call.1} parent=43 // pred_fallthru
          _
        // Predicated region
        $region73: #{tpu_custom_call.1} parent=43 // pred_check
          %p1009 = pneg %p167
        $region74: #{tpu_custom_call.1} parent=43 // pred_check_branch
          %1011 = sbr.rel (%p1009) target = $region76
        $region75: #{tpu_custom_call.1} parent=43 // pred_region
          %1012 = dma.done [#allocation7], 128
        $region76: #{tpu_custom_call.1} parent=43 // pred_fallthru
          _
      $region44: #{tpu_custom_call.1} parent=5 // pred_fallthru
        _
      %p1013 = scmp.le.s32.totalorder 2, %s18
      // Predicated region
      $region77: #{tpu_custom_call.1} parent=5 // pred_check
        %p1014 = pneg %p1013
      $region78: #{tpu_custom_call.1} parent=5 // pred_check_branch
        %1016 = sbr.rel (%p1014) target = $region80
      $region79: #{tpu_custom_call.1} parent=5 // pred_region
        %s1017 = ssub.s32 %s18, 2
      $region80: #{tpu_custom_call.1} parent=5 // pred_fallthru
        _
    $region6: #{tpu_custom_call.1} parent=1 // loop_footer
      %s22 = sadd.s32 1, %s18
    $region7: #{tpu_custom_call.1} parent=1 // loop_footer_branch
      %17 = sbr.rel target = $region3
    $region8: #{tpu_custom_call.1} parent=1 // loop_exit
      _
    %1018 = vsyncpa [#allocation6], 1
    %s1019 = scalar_lea.sflag [#allocation6], 1
    %1020 = vsyncpa %s1019, 1
    %1021 = vsyncpa [#allocation9], 1
    %1022 = vsyncpa [#allocation12], 1
    %1023 = vsyncpa [#allocation7], 1
    %s1024 = scalar_lea.sflag [#allocation7], 1
    %1025 = vsyncpa %s1024, 1

</llo_original>
